<compile_context>
chip_gen: v7x
topology: tpu7x:2x2x1
jax: 0.10.0
libtpu: 0.0.40
codegen_flags: <defaults>
</compile_context>

<pallas_src>
import functools

import jax
import jax.numpy as jnp
from jax.experimental import pallas as pl
from jax.experimental.pallas import tpu as pltpu

_SQRT_HALF = 0.7071067811865476


def _gelu_exact(x):
    # Matches torch.nn.GELU() default (erf-based, no tanh approximation).
    return 0.5 * x * (1.0 + jax.lax.erf(x * _SQRT_HALF))


def _resblock_kernel(x_ref, w1_ref, b1_ref, w2_ref, b2_ref, o_ref, tap_ref,
                     *, W, HW, NB):
    """Fused ResBlock on NB images in a lane-dense flattened (C, H*W) layout.

    x_ref:   (NB, C, HW) f32
    w*_ref:  (C, 9*C) bf16, columns ordered (ky, kx, cin) to match the tap stack
    b*_ref:  (C, 1) f32
    o_ref:   (NB, C, HW) f32
    tap_ref: (9*C, HW) f32 VMEM scratch (im2col stack, reused by both convs/all images)
    """
    C = x_ref.shape[1]
    w1 = w1_ref[...]
    w2 = w2_ref[...]
    b1 = b1_ref[...]
    b2 = b2_ref[...]

    # Wrap-column masks for the W-direction circular shifts (shared by both convs and
    # all NB images).  Power-of-two W avoids the integer modulo on the VPU.
    col = jax.lax.broadcasted_iota(jnp.int32, (C, HW), 1)
    col = (col & (W - 1)) if (W & (W - 1)) == 0 else (col % W)
    wrap_lo = col == 0
    wrap_hi = col == (W - 1)

    def conv3x3_circular(x, w_fused, b):
        """x: (C, HW) f32 -> (C, HW) f32 via one fused (C,9C) x (9C,HW) bf16 matmul."""
        # W-direction circular neighbours on the flattened lane axis: a flat roll by +-1
        # is correct everywhere except the single wrap column, patched by a +-(W-1) roll.
        x_wm1 = jnp.where(wrap_lo,
                          pltpu.roll(x, (HW - (W - 1)) % HW, axis=1),
                          pltpu.roll(x, 1, axis=1))           # x[h, (w-1) mod W]
        x_wp1 = jnp.where(wrap_hi,
                          pltpu.roll(x, W - 1, axis=1),
                          pltpu.roll(x, HW - 1, axis=1))      # x[h, (w+1) mod W]
        w_shifted = (x_wm1, x, x_wp1)                         # kx = 0, 1, 2

        # im2col: stack the 9 shifted taps along the contraction axis.  Rolling the
        # flattened image by a multiple of W is exactly a circular H shift.
        for ky in range(3):
            h_shift = (-(ky - 1) * W) % HW
            for kx in range(3):
                tap = w_shifted[kx]
                if h_shift:
                    tap = pltpu.roll(tap, h_shift, axis=1)
                t = ky * 3 + kx
                tap_ref[pl.ds(t * C, C), :] = tap             # static-offset store

        # Single fused matmul per conv: bf16 MXU operands, f32 accumulation.
        y = jax.lax.dot_general(
            w_fused, tap_ref[...].astype(jnp.bfloat16),
            dimension_numbers=(((1,), (0,)), ((), ())),
            preferred_element_type=jnp.float32)
        return y + b

    for n in range(NB):                      # static unroll over images in this block
        x = x_ref[n]                         # (C, HW) f32
        h = conv3x3_circular(x, w1, b1)
        h = _gelu_exact(h)
        h = conv3x3_circular(h, w2, b2)
        o_ref[n] = _gelu_exact(h + x)        # residual + final GELU, lane-dense store


def _images_per_block(N):
    # Amortize the per-grid-step pipeline overhead, but keep >= 2 parallel grid blocks
    # whenever N >= 2 so both v7x TensorCores get work (irrelevant on 1-TC v5e/v6e).
    if N <= 1:
        return 1
    cap = min(8, N // 2)
    for nb in range(cap, 0, -1):
        if N % nb == 0:
            return nb
    return 1


@jax.jit
def resblock_forward(x_nchw, w1, b1, w2, b2):
    """x_nchw: (N, C, H, W) f32; w*: (Cout, Cin, 3, 3) PyTorch OIHW; b*: (C,)."""
    N, C, H, W = x_nchw.shape
    assert W >= 2, "flattened-lane circular shifts assume W >= 2"
    assert w1.shape == (C, C, 3, 3) and w2.shape == (C, C, 3, 3), "ResBlock: Cin == Cout"
    HW = H * W
    NB = _images_per_block(N)

    x = x_nchw.reshape(N, C, HW).astype(jnp.float32)     # free reshape, no transpose
    # OIHW -> (Cout, ky, kx, Cin) -> (Cout, 9*Cin): matches the tap-stack row order.
    # bf16 weights: native MXU operand dtype on v5e/v6e/v7x, half the HBM/VMEM bytes.
    w1k = jnp.transpose(w1, (0, 2, 3, 1)).reshape(C, 9 * C).astype(jnp.bfloat16)
    w2k = jnp.transpose(w2, (0, 2, 3, 1)).reshape(C, 9 * C).astype(jnp.bfloat16)
    b1k = b1.reshape(C, 1).astype(jnp.float32)
    b2k = b2.reshape(C, 1).astype(jnp.float32)

    kernel = functools.partial(_resblock_kernel, W=W, HW=HW, NB=NB)

    out = pl.pallas_call(
        kernel,
        out_shape=jax.ShapeDtypeStruct((N, C, HW), jnp.float32),
        grid_spec=pltpu.PrefetchScalarGridSpec(
            num_scalar_prefetch=0,
            grid=(N // NB,),
            in_specs=[
                pl.BlockSpec((NB, C, HW), lambda n: (n, 0, 0)),
                pl.BlockSpec((C, 9 * C), lambda n: (0, 0)),   # constant block: no re-DMA
                pl.BlockSpec((C, 1), lambda n: (0, 0)),
                pl.BlockSpec((C, 9 * C), lambda n: (0, 0)),
                pl.BlockSpec((C, 1), lambda n: (0, 0)),
            ],
            out_specs=pl.BlockSpec((NB, C, HW), lambda n: (n, 0, 0)),
            scratch_shapes=[pltpu.VMEM((9 * C, HW), jnp.float32)],  # im2col stack
        ),
        compiler_params=pltpu.CompilerParams(
            dimension_semantics=("parallel",),
            vmem_limit_bytes=32 * 1024 * 1024),
    )(x, w1k, b1k, w2k, b2k)

    return out.reshape(N, C, H, W)                           # free reshape back to NCHW


def _reference_resblock(x, w1, b1, w2, b2):
    """Plain-JAX f32 reference of the PyTorch ResBlock (circular pad, exact GELU)."""
    def conv(a, w, b):
        ap = jnp.pad(a, ((0, 0), (0, 0), (1, 1), (1, 1)), mode="wrap")
        y = jax.lax.conv_general_dilated(
            ap, w, window_strides=(1, 1), padding="VALID",
            dimension_numbers=("NCHW", "OIHW", "NCHW"),
            precision=jax.lax.Precision.HIGHEST)
        return y + b.reshape(1, -1, 1, 1)

    h = _gelu_exact(conv(x, w1, b1))
    h = conv(h, w2, b2) + x
    return _gelu_exact(h)


if __name__ == "__main__":
    # Small deterministic example consistent with ResBlock(channels=4).
    N, C, H, W = 2, 4, 16, 16
    key = jax.random.PRNGKey(0)
    kx_, kw1, kb1, kw2, kb2 = jax.random.split(key, 5)

    fan_in = C * 3 * 3
    x = jax.random.normal(kx_, (N, C, H, W), jnp.float32)
    w1 = jax.random.normal(kw1, (C, C, 3, 3), jnp.float32) / jnp.sqrt(float(fan_in))
    b1 = jax.random.normal(kb1, (C,), jnp.float32) * 0.01
    w2 = jax.random.normal(kw2, (C, C, 3, 3), jnp.float32) / jnp.sqrt(float(fan_in))
    b2 = jax.random.normal(kb2, (C,), jnp.float32) * 0.01

    out = resblock_forward(x, w1, b1, w2, b2)
    jax.block_until_ready(out)
    assert out.shape == (N, C, H, W), out.shape

    # Correctness vs. the f32 (HIGHEST-precision) reference.  The kernel uses bf16 MXU
    # operands with f32 accumulation (review-recommended); max-abs tolerance documents
    # that numerics choice (observed error is ~1e-2 at these shapes).
    ref = _reference_resblock(x, w1, b1, w2, b2)
    max_err = float(jnp.max(jnp.abs(out - ref)))
    assert max_err < 1e-1, max_err

    print("KERNEL_OK")
</pallas_src>

<mosaic_0001>
module attributes {stable_mosaic.version = 11 : i64} {
  func.func @_resblock_kernel(%arg0: i32, %arg1: memref<1x4x256xf32, #tpu.memory_space<vmem>>, %arg2: memref<4x36xbf16, #tpu.memory_space<vmem>>, %arg3: memref<4x1xf32, #tpu.memory_space<vmem>>, %arg4: memref<4x36xbf16, #tpu.memory_space<vmem>>, %arg5: memref<4x1xf32, #tpu.memory_space<vmem>>, %arg6: memref<1x4x256xf32, #tpu.memory_space<vmem>>, %arg7: memref<36x256xf32, #tpu.memory_space<vmem>>) attributes {dimension_semantics = [#tpu.dimension_semantics<parallel>], iteration_bounds = array<i64: 2>, scalar_prefetch = 0 : i64, scratch_operands = 1 : i64, tpu.core_type = #tpu.core_type<tc>, window_params = [{transform_indices = @transform_0, window_bounds = array<i64: 1, 4, 256>}, {pipeline_mode = #tpu.pipeline_mode<synchronous>, transform_indices = @transform_1, window_bounds = array<i64: 4, 36>}, {pipeline_mode = #tpu.pipeline_mode<synchronous>, transform_indices = @transform_2, window_bounds = array<i64: 4, 1>}, {pipeline_mode = #tpu.pipeline_mode<synchronous>, transform_indices = @transform_3, window_bounds = array<i64: 4, 36>}, {pipeline_mode = #tpu.pipeline_mode<synchronous>, transform_indices = @transform_4, window_bounds = array<i64: 4, 1>}, {transform_indices = @transform_5, window_bounds = array<i64: 1, 4, 256>}]} {
    %c0 = arith.constant 0 : index
    %c0_0 = arith.constant 0 : index
    %0 = vector.load %arg2[%c0, %c0_0] : memref<4x36xbf16, #tpu.memory_space<vmem>>, vector<4x36xbf16>
    %c0_1 = arith.constant 0 : index
    %c0_2 = arith.constant 0 : index
    %1 = vector.load %arg4[%c0_1, %c0_2] : memref<4x36xbf16, #tpu.memory_space<vmem>>, vector<4x36xbf16>
    %c0_3 = arith.constant 0 : index
    %c0_4 = arith.constant 0 : index
    %2 = vector.load %arg3[%c0_3, %c0_4] : memref<4x1xf32, #tpu.memory_space<vmem>>, vector<4x1xf32>
    %c0_5 = arith.constant 0 : index
    %c0_6 = arith.constant 0 : index
    %3 = vector.load %arg5[%c0_5, %c0_6] : memref<4x1xf32, #tpu.memory_space<vmem>>, vector<4x1xf32>
    %4 = tpu.iota {dimensions = array<i32: 1>} : vector<4x256xi32>
    %c15_i32 = arith.constant 15 : i32
    %5 = vector.broadcast %c15_i32 : i32 to vector<4x256xi32>
    %6 = arith.andi %4, %5 : vector<4x256xi32>
    %c0_i32 = arith.constant 0 : i32
    %7 = vector.broadcast %c0_i32 : i32 to vector<4x256xi32>
    %8 = arith.cmpi eq, %6, %7 : vector<4x256xi32>
    %c15_i32_7 = arith.constant 15 : i32
    %9 = vector.broadcast %c15_i32_7 : i32 to vector<4x256xi32>
    %10 = arith.cmpi eq, %6, %9 : vector<4x256xi32>
    %c0_8 = arith.constant 0 : index
    %c0_9 = arith.constant 0 : index
    %c0_10 = arith.constant 0 : index
    %11 = vector.load %arg1[%c0_8, %c0_9, %c0_10] : memref<1x4x256xf32, #tpu.memory_space<vmem>>, vector<1x4x256xf32>
    %12 = vector.shape_cast %11 : vector<1x4x256xf32> to vector<4x256xf32>
    %c241_i32 = arith.constant 241 : i32
    %13 = tpu.dynamic_rotate %12 by %c241_i32 dim 1 : vector<4x256xf32>, i32 -> vector<4x256xf32>
    %c1_i32 = arith.constant 1 : i32
    %14 = tpu.dynamic_rotate %12 by %c1_i32 dim 1 : vector<4x256xf32>, i32 -> vector<4x256xf32>
    %15 = arith.select %8, %13, %14 : vector<4x256xi1>, vector<4x256xf32>
    %c15_i32_11 = arith.constant 15 : i32
    %16 = tpu.dynamic_rotate %12 by %c15_i32_11 dim 1 : vector<4x256xf32>, i32 -> vector<4x256xf32>
    %c255_i32 = arith.constant 255 : i32
    %17 = tpu.dynamic_rotate %12 by %c255_i32 dim 1 : vector<4x256xf32>, i32 -> vector<4x256xf32>
    %18 = arith.select %10, %16, %17 : vector<4x256xi1>, vector<4x256xf32>
    %c16_i32 = arith.constant 16 : i32
    %19 = tpu.dynamic_rotate %15 by %c16_i32 dim 1 : vector<4x256xf32>, i32 -> vector<4x256xf32>
    %c0_12 = arith.constant 0 : index
    %c0_13 = arith.constant 0 : index
    %20 = vector.load %arg7[%c0_12, %c0_13] : memref<36x256xf32, #tpu.memory_space<vmem>>, vector<4x256xf32>
    tpu.vector_store %arg7[%c0_12, %c0_13], %19 {strides = array<i32>} : memref<36x256xf32, #tpu.memory_space<vmem>>, vector<4x256xf32>,
    %c16_i32_14 = arith.constant 16 : i32
    %21 = tpu.dynamic_rotate %12 by %c16_i32_14 dim 1 : vector<4x256xf32>, i32 -> vector<4x256xf32>
    %c4 = arith.constant 4 : index
    %c0_15 = arith.constant 0 : index
    %22 = vector.load %arg7[%c4, %c0_15] : memref<36x256xf32, #tpu.memory_space<vmem>>, vector<4x256xf32>
    tpu.vector_store %arg7[%c4, %c0_15], %21 {strides = array<i32>} : memref<36x256xf32, #tpu.memory_space<vmem>>, vector<4x256xf32>,
    %c16_i32_16 = arith.constant 16 : i32
    %23 = tpu.dynamic_rotate %18 by %c16_i32_16 dim 1 : vector<4x256xf32>, i32 -> vector<4x256xf32>
    %c8 = arith.constant 8 : index
    %c0_17 = arith.constant 0 : index
    %24 = vector.load %arg7[%c8, %c0_17] : memref<36x256xf32, #tpu.memory_space<vmem>>, vector<4x256xf32>
    tpu.vector_store %arg7[%c8, %c0_17], %23 {strides = array<i32>} : memref<36x256xf32, #tpu.memory_space<vmem>>, vector<4x256xf32>,
    %c12 = arith.constant 12 : index
    %c0_18 = arith.constant 0 : index
    %25 = vector.load %arg7[%c12, %c0_18] : memref<36x256xf32, #tpu.memory_space<vmem>>, vector<4x256xf32>
    tpu.vector_store %arg7[%c12, %c0_18], %15 {strides = array<i32>} : memref<36x256xf32, #tpu.memory_space<vmem>>, vector<4x256xf32>,
    %c16 = arith.constant 16 : index
    %c0_19 = arith.constant 0 : index
    %26 = vector.load %arg7[%c16, %c0_19] : memref<36x256xf32, #tpu.memory_space<vmem>>, vector<4x256xf32>
    tpu.vector_store %arg7[%c16, %c0_19], %12 {strides = array<i32>} : memref<36x256xf32, #tpu.memory_space<vmem>>, vector<4x256xf32>,
    %c20 = arith.constant 20 : index
    %c0_20 = arith.constant 0 : index
    %27 = vector.load %arg7[%c20, %c0_20] : memref<36x256xf32, #tpu.memory_space<vmem>>, vector<4x256xf32>
    tpu.vector_store %arg7[%c20, %c0_20], %18 {strides = array<i32>} : memref<36x256xf32, #tpu.memory_space<vmem>>, vector<4x256xf32>,
    %c240_i32 = arith.constant 240 : i32
    %28 = tpu.dynamic_rotate %15 by %c240_i32 dim 1 : vector<4x256xf32>, i32 -> vector<4x256xf32>
    %c24 = arith.constant 24 : index
    %c0_21 = arith.constant 0 : index
    %29 = vector.load %arg7[%c24, %c0_21] : memref<36x256xf32, #tpu.memory_space<vmem>>, vector<4x256xf32>
    tpu.vector_store %arg7[%c24, %c0_21], %28 {strides = array<i32>} : memref<36x256xf32, #tpu.memory_space<vmem>>, vector<4x256xf32>,
    %c240_i32_22 = arith.constant 240 : i32
    %30 = tpu.dynamic_rotate %12 by %c240_i32_22 dim 1 : vector<4x256xf32>, i32 -> vector<4x256xf32>
    %c28 = arith.constant 28 : index
    %c0_23 = arith.constant 0 : index
    %31 = vector.load %arg7[%c28, %c0_23] : memref<36x256xf32, #tpu.memory_space<vmem>>, vector<4x256xf32>
    tpu.vector_store %arg7[%c28, %c0_23], %30 {strides = array<i32>} : memref<36x256xf32, #tpu.memory_space<vmem>>, vector<4x256xf32>,
    %c240_i32_24 = arith.constant 240 : i32
    %32 = tpu.dynamic_rotate %18 by %c240_i32_24 dim 1 : vector<4x256xf32>, i32 -> vector<4x256xf32>
    %c32 = arith.constant 32 : index
    %c0_25 = arith.constant 0 : index
    %33 = vector.load %arg7[%c32, %c0_25] : memref<36x256xf32, #tpu.memory_space<vmem>>, vector<4x256xf32>
    tpu.vector_store %arg7[%c32, %c0_25], %32 {strides = array<i32>} : memref<36x256xf32, #tpu.memory_space<vmem>>, vector<4x256xf32>,
    %c0_26 = arith.constant 0 : index
    %c0_27 = arith.constant 0 : index
    %34 = vector.load %arg7[%c0_26, %c0_27] : memref<36x256xf32, #tpu.memory_space<vmem>>, vector<36x256xf32>
    %35 = arith.truncf %34 : vector<36x256xf32> to vector<36x256xbf16>
    %cst = arith.constant dense<0.000000e+00> : vector<4x256xf32>
    %36 = tpu.matmul %0, %35, %cst {dimension_numbers = #tpu.dot_dimension_numbers<[1], [0], [0], [1], [0, 0, 1, 1], [], []>} : vector<4x36xbf16>, vector<36x256xbf16>, vector<4x256xf32> -> vector<4x256xf32>
    %37 = vector.broadcast %2 : vector<4x1xf32> to vector<4x256xf32>
    %38 = arith.addf %36, %37 : vector<4x256xf32>
    %cst_28 = arith.constant 5.000000e-01 : f32
    %39 = vector.broadcast %cst_28 : f32 to vector<4x256xf32>
    %40 = arith.mulf %39, %38 : vector<4x256xf32>
    %cst_29 = arith.constant 0.707106769 : f32
    %41 = vector.broadcast %cst_29 : f32 to vector<4x256xf32>
    %42 = arith.mulf %38, %41 : vector<4x256xf32>
    %43 = math.erf %42 : vector<4x256xf32>
    %cst_30 = arith.constant 1.000000e+00 : f32
    %44 = vector.broadcast %cst_30 : f32 to vector<4x256xf32>
    %45 = arith.addf %44, %43 : vector<4x256xf32>
    %46 = arith.mulf %40, %45 : vector<4x256xf32>
    %c241_i32_31 = arith.constant 241 : i32
    %47 = tpu.dynamic_rotate %46 by %c241_i32_31 dim 1 : vector<4x256xf32>, i32 -> vector<4x256xf32>
    %c1_i32_32 = arith.constant 1 : i32
    %48 = tpu.dynamic_rotate %46 by %c1_i32_32 dim 1 : vector<4x256xf32>, i32 -> vector<4x256xf32>
    %49 = arith.select %8, %47, %48 : vector<4x256xi1>, vector<4x256xf32>
    %c15_i32_33 = arith.constant 15 : i32
    %50 = tpu.dynamic_rotate %46 by %c15_i32_33 dim 1 : vector<4x256xf32>, i32 -> vector<4x256xf32>
    %c255_i32_34 = arith.constant 255 : i32
    %51 = tpu.dynamic_rotate %46 by %c255_i32_34 dim 1 : vector<4x256xf32>, i32 -> vector<4x256xf32>
    %52 = arith.select %10, %50, %51 : vector<4x256xi1>, vector<4x256xf32>
    %c16_i32_35 = arith.constant 16 : i32
    %53 = tpu.dynamic_rotate %49 by %c16_i32_35 dim 1 : vector<4x256xf32>, i32 -> vector<4x256xf32>
    %c0_36 = arith.constant 0 : index
    %c0_37 = arith.constant 0 : index
    %54 = vector.load %arg7[%c0_36, %c0_37] : memref<36x256xf32, #tpu.memory_space<vmem>>, vector<4x256xf32>
    tpu.vector_store %arg7[%c0_36, %c0_37], %53 {strides = array<i32>} : memref<36x256xf32, #tpu.memory_space<vmem>>, vector<4x256xf32>,
    %c16_i32_38 = arith.constant 16 : i32
    %55 = tpu.dynamic_rotate %46 by %c16_i32_38 dim 1 : vector<4x256xf32>, i32 -> vector<4x256xf32>
    %c4_39 = arith.constant 4 : index
    %c0_40 = arith.constant 0 : index
    %56 = vector.load %arg7[%c4_39, %c0_40] : memref<36x256xf32, #tpu.memory_space<vmem>>, vector<4x256xf32>
    tpu.vector_store %arg7[%c4_39, %c0_40], %55 {strides = array<i32>} : memref<36x256xf32, #tpu.memory_space<vmem>>, vector<4x256xf32>,
    %c16_i32_41 = arith.constant 16 : i32
    %57 = tpu.dynamic_rotate %52 by %c16_i32_41 dim 1 : vector<4x256xf32>, i32 -> vector<4x256xf32>
    %c8_42 = arith.constant 8 : index
    %c0_43 = arith.constant 0 : index
    %58 = vector.load %arg7[%c8_42, %c0_43] : memref<36x256xf32, #tpu.memory_space<vmem>>, vector<4x256xf32>
    tpu.vector_store %arg7[%c8_42, %c0_43], %57 {strides = array<i32>} : memref<36x256xf32, #tpu.memory_space<vmem>>, vector<4x256xf32>,
    %c12_44 = arith.constant 12 : index
    %c0_45 = arith.constant 0 : index
    %59 = vector.load %arg7[%c12_44, %c0_45] : memref<36x256xf32, #tpu.memory_space<vmem>>, vector<4x256xf32>
    tpu.vector_store %arg7[%c12_44, %c0_45], %49 {strides = array<i32>} : memref<36x256xf32, #tpu.memory_space<vmem>>, vector<4x256xf32>,
    %c16_46 = arith.constant 16 : index
    %c0_47 = arith.constant 0 : index
    %60 = vector.load %arg7[%c16_46, %c0_47] : memref<36x256xf32, #tpu.memory_space<vmem>>, vector<4x256xf32>
    tpu.vector_store %arg7[%c16_46, %c0_47], %46 {strides = array<i32>} : memref<36x256xf32, #tpu.memory_space<vmem>>, vector<4x256xf32>,
    %c20_48 = arith.constant 20 : index
    %c0_49 = arith.constant 0 : index
    %61 = vector.load %arg7[%c20_48, %c0_49] : memref<36x256xf32, #tpu.memory_space<vmem>>, vector<4x256xf32>
    tpu.vector_store %arg7[%c20_48, %c0_49], %52 {strides = array<i32>} : memref<36x256xf32, #tpu.memory_space<vmem>>, vector<4x256xf32>,
    %c240_i32_50 = arith.constant 240 : i32
    %62 = tpu.dynamic_rotate %49 by %c240_i32_50 dim 1 : vector<4x256xf32>, i32 -> vector<4x256xf32>
    %c24_51 = arith.constant 24 : index
    %c0_52 = arith.constant 0 : index
    %63 = vector.load %arg7[%c24_51, %c0_52] : memref<36x256xf32, #tpu.memory_space<vmem>>, vector<4x256xf32>
    tpu.vector_store %arg7[%c24_51, %c0_52], %62 {strides = array<i32>} : memref<36x256xf32, #tpu.memory_space<vmem>>, vector<4x256xf32>,
    %c240_i32_53 = arith.constant 240 : i32
    %64 = tpu.dynamic_rotate %46 by %c240_i32_53 dim 1 : vector<4x256xf32>, i32 -> vector<4x256xf32>
    %c28_54 = arith.constant 28 : index
    %c0_55 = arith.constant 0 : index
    %65 = vector.load %arg7[%c28_54, %c0_55] : memref<36x256xf32, #tpu.memory_space<vmem>>, vector<4x256xf32>
    tpu.vector_store %arg7[%c28_54, %c0_55], %64 {strides = array<i32>} : memref<36x256xf32, #tpu.memory_space<vmem>>, vector<4x256xf32>,
    %c240_i32_56 = arith.constant 240 : i32
    %66 = tpu.dynamic_rotate %52 by %c240_i32_56 dim 1 : vector<4x256xf32>, i32 -> vector<4x256xf32>
    %c32_57 = arith.constant 32 : index
    %c0_58 = arith.constant 0 : index
    %67 = vector.load %arg7[%c32_57, %c0_58] : memref<36x256xf32, #tpu.memory_space<vmem>>, vector<4x256xf32>
    tpu.vector_store %arg7[%c32_57, %c0_58], %66 {strides = array<i32>} : memref<36x256xf32, #tpu.memory_space<vmem>>, vector<4x256xf32>,
    %c0_59 = arith.constant 0 : index
    %c0_60 = arith.constant 0 : index
    %68 = vector.load %arg7[%c0_59, %c0_60] : memref<36x256xf32, #tpu.memory_space<vmem>>, vector<36x256xf32>
    %69 = arith.truncf %68 : vector<36x256xf32> to vector<36x256xbf16>
    %cst_61 = arith.constant dense<0.000000e+00> : vector<4x256xf32>
    %70 = tpu.matmul %1, %69, %cst_61 {dimension_numbers = #tpu.dot_dimension_numbers<[1], [0], [0], [1], [0, 0, 1, 1], [], []>} : vector<4x36xbf16>, vector<36x256xbf16>, vector<4x256xf32> -> vector<4x256xf32>
    %71 = vector.broadcast %3 : vector<4x1xf32> to vector<4x256xf32>
    %72 = arith.addf %70, %71 : vector<4x256xf32>
    %73 = arith.addf %72, %12 : vector<4x256xf32>
    %cst_62 = arith.constant 5.000000e-01 : f32
    %74 = vector.broadcast %cst_62 : f32 to vector<4x256xf32>
    %75 = arith.mulf %74, %73 : vector<4x256xf32>
    %cst_63 = arith.constant 0.707106769 : f32
    %76 = vector.broadcast %cst_63 : f32 to vector<4x256xf32>
    %77 = arith.mulf %73, %76 : vector<4x256xf32>
    %78 = math.erf %77 : vector<4x256xf32>
    %cst_64 = arith.constant 1.000000e+00 : f32
    %79 = vector.broadcast %cst_64 : f32 to vector<4x256xf32>
    %80 = arith.addf %79, %78 : vector<4x256xf32>
    %81 = arith.mulf %75, %80 : vector<4x256xf32>
    %c0_65 = arith.constant 0 : index
    %c0_66 = arith.constant 0 : index
    %c0_67 = arith.constant 0 : index
    %82 = vector.load %arg6[%c0_65, %c0_66, %c0_67] : memref<1x4x256xf32, #tpu.memory_space<vmem>>, vector<1x4x256xf32>
    %83 = vector.shape_cast %82 : vector<1x4x256xf32> to vector<4x256xf32>
    %84 = vector.shape_cast %81 : vector<4x256xf32> to vector<1x4x256xf32>
    tpu.vector_store %arg6[%c0_65, %c0_66, %c0_67], %84 {strides = array<i32>} : memref<1x4x256xf32, #tpu.memory_space<vmem>>, vector<1x4x256xf32>,
    return
  }
  func.func @transform_0(%arg0: i32) -> (i32, i32, i32) {
    %c0_i32 = arith.constant 0 : i32
    %c0_i32_0 = arith.constant 0 : i32
    %c0_i32_1 = arith.constant 0 : i32
    return %arg0, %c0_i32, %c0_i32_0 : i32, i32, i32
  }
  func.func @transform_1(%arg0: i32) -> (i32, i32) {
    %c0_i32 = arith.constant 0 : i32
    %c0_i32_0 = arith.constant 0 : i32
    %c0_i32_1 = arith.constant 0 : i32
    return %c0_i32, %c0_i32_0 : i32, i32
  }
  func.func @transform_2(%arg0: i32) -> (i32, i32) {
    %c0_i32 = arith.constant 0 : i32
    %c0_i32_0 = arith.constant 0 : i32
    %c0_i32_1 = arith.constant 0 : i32
    return %c0_i32, %c0_i32_0 : i32, i32
  }
  func.func @transform_3(%arg0: i32) -> (i32, i32) {
    %c0_i32 = arith.constant 0 : i32
    %c0_i32_0 = arith.constant 0 : i32
    %c0_i32_1 = arith.constant 0 : i32
    return %c0_i32, %c0_i32_0 : i32, i32
  }
  func.func @transform_4(%arg0: i32) -> (i32, i32) {
    %c0_i32 = arith.constant 0 : i32
    %c0_i32_0 = arith.constant 0 : i32
    %c0_i32_1 = arith.constant 0 : i32
    return %c0_i32, %c0_i32_0 : i32, i32
  }
  func.func @transform_5(%arg0: i32) -> (i32, i32, i32) {
    %c0_i32 = arith.constant 0 : i32
    %c0_i32_0 = arith.constant 0 : i32
    %c0_i32_1 = arith.constant 0 : i32
    return %arg0, %c0_i32, %c0_i32_0 : i32, i32, i32
  }
}

</mosaic_0001>

<llo_original>
// kernel: resblock_forward.1
$region0: #{resblock_forward.1}
  #allocation0 [shape = 'u32[]', space=smem, size = 0x4, offset = 0x4, fixed_abs, tag = 'smem constant byte address 0x4 - core index']
  #allocation1 [shape = 'u32[144,128]{1,0:T(1,128)}', space=vmem, size = 0x12000, scoped, tag = 'internal scratch']
  #allocation2 [shape = 'f32[36,256]{1,0:T(8,128)}', space=vmem, size = 0xa000, scoped, tag = 'scratch operand']
  %s0 = inlined_call_operand.vmem [shape: f32[2,4,256], index: 0, kind: input, shape index: {}]
  %s1 = inlined_call_operand.vmem [shape: bf16[4,36], index: 1, kind: input, shape index: {}]
  %s2 = inlined_call_operand.vmem [shape: f32[4,1], index: 2, kind: input, shape index: {}]
  %s3 = inlined_call_operand.vmem [shape: bf16[4,36], index: 3, kind: input, shape index: {}]
  %s4 = inlined_call_operand.vmem [shape: f32[4,1], index: 4, kind: input, shape index: {}]
  %s5 = inlined_call_operand.vmem [shape: f32[2,4,256], index: 5, kind: output, shape index: {}]
  %s6 = sld [smem:[#allocation0]]
  $region53: #{resblock_forward.1} parent=0
    _
  %s8 = ssub.s32 1, %s6
  %s9 = scalar_select 0, %s8, %s6
  loop: start=0, step=1, limit=4
  $region2: #{resblock_forward.1} parent=0 // loop_pre_header
    _
  $region3: #{resblock_forward.1} parent=0 // loop_header
    %s11 = sphi 0, %s15
    %p12 = scmp.ge.s32.totalorder %s11, 4
    %s21 = sphi 0, %s23
    %s24 = sphi 0, %s21
    %s25 = sphi 0, %s24
    %s41 = sphi 0, %s25
    %s45 = sphi 0, %s45
    %s47 = sphi 0, %s45
    %s48 = sphi 0, %s47
    %s62 = sphi 0, %s48
    %s66 = sphi 0, %s66
    %s68 = sphi 0, %s66
    %s69 = sphi 0, %s68
    %s83 = sphi 0, %s69
    %s87 = sphi 0, %s87
    %s89 = sphi 0, %s87
    %s90 = sphi 0, %s89
    %s104 = sphi 0, %s90
    %s108 = sphi 0, %s108
    %s110 = sphi 0, %s108
    %s111 = sphi 0, %s110
    %s125 = sphi 0, %s111
    %s131 = sphi 0, %s133
    %s134 = sphi 0, %s131
    %s135 = sphi 0, %s134
    %s151 = sphi 0, %s135
  $region4: #{resblock_forward.1} parent=0 // loop_header_branch
    %14 = sbr.rel (%p12) target = $region8
  $region5: #{resblock_forward.1} parent=0 // loop_body
    %s16 = ssub.s32 %s11, 1
    %s17 = ssub.s32 %s11, 2
    %s18 = sadd.s32 %s11, 1
    %s19 = ssub.s32 %s11, %s18
    %p20 = scmp.eq.s32.totalorder %s19, 0
    %s22 = sadd.s32 %s21, 1
    %s23 = scalar_select %p20, %s21, %s22
    %p26 = pneg %p20
    %p27 = scmp.eq.s32.totalorder %s11, 1
    %p28 = por %p26, %p27
    %p29 = scmp.ne.s32.totalorder %s21, %s24
    %p30 = scmp.eq.s32.totalorder %s11, 0
    %p31 = por %p29, %p30
    %p32 = scmp.ne.s32.totalorder %s21, %s24
    %p33 = scmp.eq.s32.totalorder %s16, 1
    %p34 = por %p32, %p33
    %p35 = scmp.ne.s32.totalorder %s24, %s25
    %p36 = scmp.eq.s32.totalorder %s16, 0
    %p37 = por %p35, %p36
    %p38 = scmp.ne.s32.totalorder %s24, %s25
    %p39 = scmp.eq.s32.totalorder %s17, 1
    %p40 = por %p38, %p39
    %p42 = scmp.ne.s32.totalorder %s25, %s41
    %p43 = scmp.eq.s32.totalorder %s17, 0
    %p44 = por %p42, %p43
    %s46 = sadd.s32 %s45, 1
    %p49 = scmp.eq.s32.totalorder %s11, 1
    %p50 = scmp.ne.s32.totalorder %s45, %s47
    %p51 = scmp.eq.s32.totalorder %s11, 0
    %p52 = por %p50, %p51
    %p53 = scmp.ne.s32.totalorder %s45, %s47
    %p54 = scmp.eq.s32.totalorder %s16, 1
    %p55 = por %p53, %p54
    %p56 = scmp.ne.s32.totalorder %s47, %s48
    %p57 = scmp.eq.s32.totalorder %s16, 0
    %p58 = por %p56, %p57
    %p59 = scmp.ne.s32.totalorder %s47, %s48
    %p60 = scmp.eq.s32.totalorder %s17, 1
    %p61 = por %p59, %p60
    %p63 = scmp.ne.s32.totalorder %s48, %s62
    %p64 = scmp.eq.s32.totalorder %s17, 0
    %p65 = por %p63, %p64
    %s67 = sadd.s32 %s66, 1
    %p70 = scmp.eq.s32.totalorder %s11, 1
    %p71 = scmp.ne.s32.totalorder %s66, %s68
    %p72 = scmp.eq.s32.totalorder %s11, 0
    %p73 = por %p71, %p72
    %p74 = scmp.ne.s32.totalorder %s66, %s68
    %p75 = scmp.eq.s32.totalorder %s16, 1
    %p76 = por %p74, %p75
    %p77 = scmp.ne.s32.totalorder %s68, %s69
    %p78 = scmp.eq.s32.totalorder %s16, 0
    %p79 = por %p77, %p78
    %p80 = scmp.ne.s32.totalorder %s68, %s69
    %p81 = scmp.eq.s32.totalorder %s17, 1
    %p82 = por %p80, %p81
    %p84 = scmp.ne.s32.totalorder %s69, %s83
    %p85 = scmp.eq.s32.totalorder %s17, 0
    %p86 = por %p84, %p85
    %s88 = sadd.s32 %s87, 1
    %p91 = scmp.eq.s32.totalorder %s11, 1
    %p92 = scmp.ne.s32.totalorder %s87, %s89
    %p93 = scmp.eq.s32.totalorder %s11, 0
    %p94 = por %p92, %p93
    %p95 = scmp.ne.s32.totalorder %s87, %s89
    %p96 = scmp.eq.s32.totalorder %s16, 1
    %p97 = por %p95, %p96
    %p98 = scmp.ne.s32.totalorder %s89, %s90
    %p99 = scmp.eq.s32.totalorder %s16, 0
    %p100 = por %p98, %p99
    %p101 = scmp.ne.s32.totalorder %s89, %s90
    %p102 = scmp.eq.s32.totalorder %s17, 1
    %p103 = por %p101, %p102
    %p105 = scmp.ne.s32.totalorder %s90, %s104
    %p106 = scmp.eq.s32.totalorder %s17, 0
    %p107 = por %p105, %p106
    %s109 = sadd.s32 %s108, 1
    %p112 = scmp.eq.s32.totalorder %s11, 1
    %p113 = scmp.ne.s32.totalorder %s108, %s110
    %p114 = scmp.eq.s32.totalorder %s11, 0
    %p115 = por %p113, %p114
    %p116 = scmp.ne.s32.totalorder %s108, %s110
    %p117 = scmp.eq.s32.totalorder %s16, 1
    %p118 = por %p116, %p117
    %p119 = scmp.ne.s32.totalorder %s110, %s111
    %p120 = scmp.eq.s32.totalorder %s16, 0
    %p121 = por %p119, %p120
    %p122 = scmp.ne.s32.totalorder %s110, %s111
    %p123 = scmp.eq.s32.totalorder %s17, 1
    %p124 = por %p122, %p123
    %p126 = scmp.ne.s32.totalorder %s111, %s125
    %p127 = scmp.eq.s32.totalorder %s17, 0
    %p128 = por %p126, %p127
    %s129 = ssub.s32 %s11, %s18
    %p130 = scmp.eq.s32.totalorder %s129, 0
    %s132 = sadd.s32 %s131, 1
    %s133 = scalar_select %p130, %s131, %s132
    %p136 = pneg %p130
    %p137 = scmp.eq.s32.totalorder %s11, 1
    %p138 = por %p136, %p137
    %p139 = scmp.ne.s32.totalorder %s131, %s134
    %p140 = scmp.eq.s32.totalorder %s11, 0
    %p141 = por %p139, %p140
    %p142 = scmp.ne.s32.totalorder %s131, %s134
    %p143 = scmp.eq.s32.totalorder %s16, 1
    %p144 = por %p142, %p143
    %p145 = scmp.ne.s32.totalorder %s134, %s135
    %p146 = scmp.eq.s32.totalorder %s16, 0
    %p147 = por %p145, %p146
    %p148 = scmp.ne.s32.totalorder %s134, %s135
    %p149 = scmp.eq.s32.totalorder %s17, 1
    %p150 = por %p148, %p149
    %p152 = scmp.ne.s32.totalorder %s135, %s151
    %p153 = scmp.eq.s32.totalorder %s17, 0
    %p154 = por %p152, %p153
    %p155 = scmp.le.s32.totalorder 1, %s11
    %p156 = scmp.lt.s32.totalorder %s11, 3
    %p157 = pnand %p155, %p156
    %p158 = pneg %p157
    // Predicated region
    $region9: #{resblock_forward.1} parent=5 // pred_check
      _
    $region10: #{resblock_forward.1} parent=5 // pred_check_branch
      %160 = sbr.rel (%p157) target = $region12
    $region11: #{resblock_forward.1} parent=5 // pred_region
      %s161 = ssub.s32 %s11, 1
      // Predicated region
      $region13: #{resblock_forward.1} parent=11 // pred_check
        %p162 = pneg %p58
      $region14: #{resblock_forward.1} parent=11 // pred_check_branch
        %164 = sbr.rel (%p162) target = $region16
      $region15: #{resblock_forward.1} parent=11 // pred_region
        _
      $region16: #{resblock_forward.1} parent=11 // pred_fallthru
        _
      // Predicated region
      $region17: #{resblock_forward.1} parent=11 // pred_check
        %p165 = pneg %p79
      $region18: #{resblock_forward.1} parent=11 // pred_check_branch
        %167 = sbr.rel (%p165) target = $region20
      $region19: #{resblock_forward.1} parent=11 // pred_region
        _
      $region20: #{resblock_forward.1} parent=11 // pred_fallthru
        _
      // Predicated region
      $region21: #{resblock_forward.1} parent=11 // pred_check
        %p168 = pneg %p100
      $region22: #{resblock_forward.1} parent=11 // pred_check_branch
        %170 = sbr.rel (%p168) target = $region24
      $region23: #{resblock_forward.1} parent=11 // pred_region
        _
      $region24: #{resblock_forward.1} parent=11 // pred_fallthru
        _
      // Predicated region
      $region25: #{resblock_forward.1} parent=11 // pred_check
        %p171 = pneg %p121
      $region26: #{resblock_forward.1} parent=11 // pred_check_branch
        %173 = sbr.rel (%p171) target = $region28
      $region27: #{resblock_forward.1} parent=11 // pred_region
        _
      $region28: #{resblock_forward.1} parent=11 // pred_fallthru
        _
    $region12: #{resblock_forward.1} parent=5 // pred_fallthru
      _
    %p174 = scmp.lt.s32.totalorder %s11, 2
    // Predicated region
    $region29: #{resblock_forward.1} parent=5 // pred_check
      %p175 = pneg %p174
    $region30: #{resblock_forward.1} parent=5 // pred_check_branch
      %177 = sbr.rel (%p175) target = $region32
    $region31: #{resblock_forward.1} parent=5 // pred_region
      // Predicated region
      $region33: #{resblock_forward.1} parent=31 // pred_check
        %p178 = pneg %p31
      $region34: #{resblock_forward.1} parent=31 // pred_check_branch
        %180 = sbr.rel (%p178) target = $region36
      $region35: #{resblock_forward.1} parent=31 // pred_region
        %p181 = scmp.lt.s32.totalorder %s11, 1
        %s182 = scalar_select %p181, %s11, 1
        %s183 = smul.addr %s182, 2
        %s184 = smul.addr %s183, 4
        %s185 = scalar_lea.vmem %s0, %s184
      $region36: #{resblock_forward.1} parent=31 // pred_fallthru
        _
    $region32: #{resblock_forward.1} parent=5 // pred_fallthru
      _
    %p186 = scmp.le.s32.totalorder 1, %s11
    %p187 = scmp.lt.s32.totalorder %s11, 3
    %p188 = pnand %p186, %p187
    %p189 = pneg %p188
    // Predicated region
    $region37: #{resblock_forward.1} parent=5 // pred_check
      _
    $region38: #{resblock_forward.1} parent=5 // pred_check_branch
      %191 = sbr.rel (%p188) target = $region40
    $region39: #{resblock_forward.1} parent=5 // pred_region
      %s192 = ssub.s32 %s11, 1
      %p193 = scmp.lt.s32.totalorder %s16, 1
      %s194 = scalar_select %p193, %s16, 1
      %s195 = smul.addr %s194, 2
      %s196 = smul.addr %s195, 4
      %s197 = scalar_lea.vmem %s0, %s196
      %p198 = pneg %p37
      %p199 = pneg %p34
      %p200 = pneg %p58
      %p201 = pneg %p55
      %p202 = pneg %p79
      %p203 = pneg %p76
      %p204 = pneg %p100
      %p205 = pneg %p97
      %p206 = pneg %p121
      %p207 = pneg %p118
      %p208 = pneg %p147
      %p209 = pneg %p144
      %p210 = scmp.lt.s32.totalorder %s16, 1
      %s211 = scalar_select %p210, %s16, 1
      %s212 = smul.addr %s211, 2
      %s213 = smul.addr %s212, 4
      %s214 = scalar_lea.vmem %s5, %s213
      %p215 = scmp.lt.s32.totalorder %s16, 1
      %s216 = scalar_select %p215, %s16, 1
      %s217 = smul.addr %s216, 2
      %s218 = smul.addr %s217, 4
      %s219 = scalar_lea.vmem %s0, %s218
      %p220 = scmp.lt.s32.totalorder %s16, 1
      %s221 = scalar_select %p220, %s16, 1
      %s222 = smul.addr %s221, 2
      %s223 = smul.addr %s222, 4
      %s224 = scalar_lea.vmem %s5, %s223
      %v226 = vld [vmem:[%s1] sm:$0x3]
      %v227 = vld [vmem:[%s3] sm:$0x3]
      %v228 = vld [vmem:[%s2] sm:$0xf]
      %v229 = vld [vmem:[%s4] sm:$0xf]
      %v230 = vlaneseq
      %v231 = vand.u32 %v230, 127
      %v232 = vadd.s32 %v231, 128
      %v233 = vand.u32 %v231, 15
      %v234 = vand.u32 %v232, 15
      %vm235 = vcmp.eq.s32.totalorder %v233, 0
      %vm236 = vcmp.eq.s32.totalorder %v234, 0
      %vm237 = vcmp.eq.s32.totalorder %v233, 15
      %vm238 = vcmp.eq.s32.totalorder %v234, 15
      %v239 = vld [vmem:[%s219] sm:$0xff]
      %v241 = vcombine.high %v239, %v239
      %243 = vrot.lane.b32.xlu0 %v239, 113
      %v244 = vpop.permute.xlu0 %243
      %245 = vrot.lane.b32.xlu0 %v241, 113
      %v246 = vpop.permute.xlu0 %245
      %vm247 = vcmp.lt.s32.totalorder %v231, 113
      %v248 = vsel %vm247, %v244, %v246
      %v249 = vsel %vm247, %v246, %v244
      %250 = vrot.lane.b32.xlu0 %v239, 1
      %v251 = vpop.permute.xlu0 %250
      %252 = vrot.lane.b32.xlu0 %v241, 1
      %v253 = vpop.permute.xlu0 %252
      %vm254 = vcmp.lt.s32.totalorder %v231, 1
      %v255 = vsel %vm254, %v251, %v253
      %v256 = vsel %vm254, %v253, %v251
      %v257 = vsel %vm235, %v248, %v256
      %v258 = vsel %vm236, %v249, %v255
      %259 = vrot.lane.b32.xlu0 %v239, 15
      %v260 = vpop.permute.xlu0 %259
      %261 = vrot.lane.b32.xlu0 %v241, 15
      %v262 = vpop.permute.xlu0 %261
      %vm263 = vcmp.lt.s32.totalorder %v231, 15
      %v264 = vsel %vm263, %v260, %v262
      %v265 = vsel %vm263, %v262, %v260
      %266 = vrot.lane.b32.xlu0 %v239, 127
      %v267 = vpop.permute.xlu0 %266
      %268 = vrot.lane.b32.xlu0 %v241, 127
      %v269 = vpop.permute.xlu0 %268
      %vm270 = vcmp.lt.s32.totalorder %v231, 127
      %v271 = vsel %vm270, %v267, %v269
      %v272 = vsel %vm270, %v269, %v267
      %v273 = vsel %vm237, %v265, %v271
      %v274 = vsel %vm238, %v264, %v272
      %275 = vrot.lane.b32.xlu0 %v257, 16
      %v276 = vpop.permute.xlu0 %275
      %277 = vrot.lane.b32.xlu0 %v258, 16
      %v278 = vpop.permute.xlu0 %277
      %vm279 = vcmp.lt.s32.totalorder %v231, 16
      %v280 = vsel %vm279, %v276, %v278
      %v281 = vsel %vm279, %v278, %v276
      %282 = vst [vmem:[#allocation2] sm:$0xf] %v281
      %283 = vst [vmem:[#allocation2 + $0x8] sm:$0xf] %v280
      %284 = vrot.lane.b32.xlu0 %v239, 16
      %v285 = vpop.permute.xlu0 %284
      %286 = vrot.lane.b32.xlu0 %v241, 16
      %v287 = vpop.permute.xlu0 %286
      %v288 = vsel %vm279, %v285, %v287
      %v289 = vsel %vm279, %v287, %v285
      %v292 = vrot.slane %v289, 4
      %v293 = vrot.slane %v288, 4
      %296 = vst [vmem:[#allocation2] sm:$0xf0] %v292
      %297 = vst [vmem:[#allocation2 + $0x8] sm:$0xf0] %v293
      %298 = vrot.lane.b32.xlu0 %v273, 16
      %v299 = vpop.permute.xlu0 %298
      %300 = vrot.lane.b32.xlu0 %v274, 16
      %v301 = vpop.permute.xlu0 %300
      %v302 = vsel %vm279, %v299, %v301
      %v303 = vsel %vm279, %v301, %v299
      %304 = vst [vmem:[#allocation2 + $0x10] sm:$0xf] %v303
      %305 = vst [vmem:[#allocation2 + $0x18] sm:$0xf] %v302
      %v308 = vrot.slane %v257, 4
      %v309 = vrot.slane %v258, 4
      %312 = vst [vmem:[#allocation2 + $0x10] sm:$0xf0] %v308
      %313 = vst [vmem:[#allocation2 + $0x18] sm:$0xf0] %v309
      %314 = vst [vmem:[#allocation2 + $0x20] sm:$0xf] %v239
      %315 = vst [vmem:[#allocation2 + $0x28] sm:$0xf] %v241
      %v318 = vrot.slane %v273, 4
      %v319 = vrot.slane %v274, 4
      %322 = vst [vmem:[#allocation2 + $0x20] sm:$0xf0] %v318
      %323 = vst [vmem:[#allocation2 + $0x28] sm:$0xf0] %v319
      %324 = vrot.lane.b32.xlu0 %v257, 112
      %v325 = vpop.permute.xlu0 %324
      %326 = vrot.lane.b32.xlu0 %v258, 112
      %v327 = vpop.permute.xlu0 %326
      %vm328 = vcmp.lt.s32.totalorder %v231, 112
      %v329 = vsel %vm328, %v325, %v327
      %v330 = vsel %vm328, %v327, %v325
      %331 = vst [vmem:[#allocation2 + $0x30] sm:$0xf] %v329
      %332 = vst [vmem:[#allocation2 + $0x38] sm:$0xf] %v330
      %333 = vrot.lane.b32.xlu0 %v239, 112
      %v334 = vpop.permute.xlu0 %333
      %335 = vrot.lane.b32.xlu0 %v241, 112
      %v336 = vpop.permute.xlu0 %335
      %v337 = vsel %vm328, %v334, %v336
      %v338 = vsel %vm328, %v336, %v334
      %v341 = vrot.slane %v337, 4
      %v342 = vrot.slane %v338, 4
      %345 = vst [vmem:[#allocation2 + $0x30] sm:$0xf0] %v341
      %346 = vst [vmem:[#allocation2 + $0x38] sm:$0xf0] %v342
      %347 = vrot.lane.b32.xlu0 %v273, 112
      %v348 = vpop.permute.xlu0 %347
      %349 = vrot.lane.b32.xlu0 %v274, 112
      %v350 = vpop.permute.xlu0 %349
      %v351 = vsel %vm328, %v348, %v350
      %v352 = vsel %vm328, %v350, %v348
      %353 = vst [vmem:[#allocation2 + $0x40] sm:$0xf] %v351
      %354 = vst [vmem:[#allocation2 + $0x48] sm:$0xf] %v352
      %v355 = vld [vmem:[#allocation2] sm:$0xff]
      %v356 = vld [vmem:[#allocation2 + $0x8] sm:$0xff]
      %v357 = vld [vmem:[#allocation2 + $0x10] sm:$0xff]
      %v358 = vld [vmem:[#allocation2 + $0x18] sm:$0xff]
      %v359 = vld [vmem:[#allocation2 + $0x20] sm:$0xff]
      %v360 = vld [vmem:[#allocation2 + $0x28] sm:$0xff]
      %v361 = vld [vmem:[#allocation2 + $0x30] sm:$0xff]
      %v362 = vld [vmem:[#allocation2 + $0x38] sm:$0xff]
      %v363 = vld [vmem:[#allocation2 + $0x40] sm:$0xf]
      %v364 = vld [vmem:[#allocation2 + $0x48] sm:$0xf]
      %v365 = vpack.c.bf16 %v357, %v355
      %v366 = vpack.c.bf16 %v358, %v356
      %v367 = vpack.c.bf16 %v361, %v359
      %v368 = vpack.c.bf16 %v362, %v360
      %v369 = vpack.c.bf16 %v363, %v363
      %v370 = vpack.c.bf16 %v364, %v364
      %372 = vset.pattern.permute.xlu0 0
      %373 = vperm.xlu0 %372, %v228
      %v374 = vpop.permute.xlu0 %373
      %vm376 = vcmask 293888
      %v378 = vsel %vm376, %v226, 0
      %vm380 = vcmask 1041408
      %v382 = vsel %vm380, %v369, 0
      %v385 = vsel %vm380, %v370, 0
      %387 = vmatprep.subr.bf16.mxu0 %v366
      %388 = vmatpush1.bf16.msra.mxu0 %v365
      %389 = vmatprep.subr.bf16.mxu0 %v368
      %390 = vmatpush1.bf16.msra.mxu0 %v367
      %391 = vmatprep.subr.bf16.mxu0 %v385
      %392 = vmatpush1.bf16.msra.mxu0 %v382
      %393 = vmatprep.subr.bf16.mxu0 0
      %394 = vmatpush1.bf16.msra.mxu0 0
      %395 = vmatprep.subr.bf16.mxu0 0
      %396 = vmatpush1.bf16.msra.mxu0 0
      %397 = vmatprep.subr.bf16.mxu0 0
      %398 = vmatpush1.bf16.msra.mxu0 0
      %399 = vmatprep.subr.bf16.mxu0 0
      %400 = vmatpush1.bf16.msra.mxu0 0
      %401 = vmatprep.subr.bf16.mxu0 0
      %402 = vmatpush1.bf16.msra.mxu0 0
      %403 = vmatprep.subr.bf16.mxu0 0
      %404 = vmatpush1.bf16.msra.mxu0 0
      %405 = vmatprep.subr.bf16.mxu0 0
      %406 = vmatpush1.bf16.msra.mxu0 0
      %407 = vmatprep.subr.bf16.mxu0 0
      %408 = vmatpush1.bf16.msra.mxu0 0
      %409 = vmatprep.subr.bf16.mxu0 0
      %410 = vmatpush1.bf16.msra.mxu0 0
      %411 = vmatprep.subr.bf16.mxu0 0
      %412 = vmatpush1.bf16.msra.mxu0 0
      %413 = vmatprep.subr.bf16.mxu0 0
      %414 = vmatpush1.bf16.msra.mxu0 0
      %415 = vmatprep.subr.bf16.mxu0 0
      %416 = vmatpush1.bf16.msra.mxu0 0
      %417 = vmatprep.subr.bf16.mxu0 0
      %418 = vmatpush1.bf16.msra.mxu0 0
      %419 = vmatprep.mubr.bf16.mxu0 0
      %420 = vmatmul.mubr.bf16.gmra.mrb[0].mxu0 %v378
      %v421 = vpop.f32.mrb[0].mxu0
      %v422 = vadd.f32 %v374, %v421
      %v423 = vpop.f32.mrb[0].mxu0
      %v424 = vadd.f32 %v374, %v423
      %v425 = vpop.f32.mrb[0].mxu0
      %v426 = vpop.f32.mrb[0].mxu0
      %427 = vdwg.mxu0
      %v428 = vmul.f32 %v422, 0.5
      %v429 = vmul.f32 %v424, 0.5
      %v430 = vmul.f32 %v422, 0.70710677
      %v431 = vmul.f32 %v424, 0.70710677
      %v432 = verf.f32.pop %v430
      %v433 = verf.f32.pop %v431
      %v434 = vadd.f32 %v432, 1.0
      %v435 = vadd.f32 %v433, 1.0
      %v436 = vmul.f32 %v428, %v434
      %v437 = vmul.f32 %v429, %v435
      %438 = vrot.lane.b32.xlu0 %v436, 113
      %v439 = vpop.permute.xlu0 %438
      %440 = vrot.lane.b32.xlu0 %v437, 113
      %v441 = vpop.permute.xlu0 %440
      %v442 = vsel %vm247, %v439, %v441
      %v443 = vsel %vm247, %v441, %v439
      %444 = vrot.lane.b32.xlu0 %v436, 1
      %v445 = vpop.permute.xlu0 %444
      %446 = vrot.lane.b32.xlu0 %v437, 1
      %v447 = vpop.permute.xlu0 %446
      %v448 = vsel %vm254, %v445, %v447
      %v449 = vsel %vm254, %v447, %v445
      %v450 = vsel %vm235, %v442, %v449
      %v451 = vsel %vm236, %v443, %v448
      %452 = vrot.lane.b32.xlu0 %v436, 15
      %v453 = vpop.permute.xlu0 %452
      %454 = vrot.lane.b32.xlu0 %v437, 15
      %v455 = vpop.permute.xlu0 %454
      %v456 = vsel %vm263, %v453, %v455
      %v457 = vsel %vm263, %v455, %v453
      %458 = vrot.lane.b32.xlu0 %v436, 127
      %v459 = vpop.permute.xlu0 %458
      %460 = vrot.lane.b32.xlu0 %v437, 127
      %v461 = vpop.permute.xlu0 %460
      %v462 = vsel %vm270, %v459, %v461
      %v463 = vsel %vm270, %v461, %v459
      %v464 = vsel %vm237, %v457, %v462
      %v465 = vsel %vm238, %v456, %v463
      %466 = vrot.lane.b32.xlu0 %v450, 16
      %v467 = vpop.permute.xlu0 %466
      %468 = vrot.lane.b32.xlu0 %v451, 16
      %v469 = vpop.permute.xlu0 %468
      %v470 = vsel %vm279, %v467, %v469
      %v471 = vsel %vm279, %v469, %v467
      %472 = vst [vmem:[#allocation2] sm:$0xf] %v471
      %473 = vst [vmem:[#allocation2 + $0x8] sm:$0xf] %v470
      %474 = vrot.lane.b32.xlu0 %v436, 16
      %v475 = vpop.permute.xlu0 %474
      %476 = vrot.lane.b32.xlu0 %v437, 16
      %v477 = vpop.permute.xlu0 %476
      %v478 = vsel %vm279, %v475, %v477
      %v479 = vsel %vm279, %v477, %v475
      %v482 = vrot.slane %v479, 4
      %v483 = vrot.slane %v478, 4
      %486 = vst [vmem:[#allocation2] sm:$0xf0] %v482
      %487 = vst [vmem:[#allocation2 + $0x8] sm:$0xf0] %v483
      %488 = vrot.lane.b32.xlu0 %v464, 16
      %v489 = vpop.permute.xlu0 %488
      %490 = vrot.lane.b32.xlu0 %v465, 16
      %v491 = vpop.permute.xlu0 %490
      %v492 = vsel %vm279, %v489, %v491
      %v493 = vsel %vm279, %v491, %v489
      %494 = vst [vmem:[#allocation2 + $0x10] sm:$0xf] %v493
      %495 = vst [vmem:[#allocation2 + $0x18] sm:$0xf] %v492
      %v498 = vrot.slane %v450, 4
      %v499 = vrot.slane %v451, 4
      %502 = vst [vmem:[#allocation2 + $0x10] sm:$0xf0] %v498
      %503 = vst [vmem:[#allocation2 + $0x18] sm:$0xf0] %v499
      %504 = vst [vmem:[#allocation2 + $0x20] sm:$0xf] %v436
      %505 = vst [vmem:[#allocation2 + $0x28] sm:$0xf] %v437
      %v508 = vrot.slane %v464, 4
      %v509 = vrot.slane %v465, 4
      %512 = vst [vmem:[#allocation2 + $0x20] sm:$0xf0] %v508
      %513 = vst [vmem:[#allocation2 + $0x28] sm:$0xf0] %v509
      %514 = vrot.lane.b32.xlu0 %v450, 112
      %v515 = vpop.permute.xlu0 %514
      %516 = vrot.lane.b32.xlu0 %v451, 112
      %v517 = vpop.permute.xlu0 %516
      %v518 = vsel %vm328, %v515, %v517
      %v519 = vsel %vm328, %v517, %v515
      %520 = vst [vmem:[#allocation2 + $0x30] sm:$0xf] %v518
      %521 = vst [vmem:[#allocation2 + $0x38] sm:$0xf] %v519
      %522 = vrot.lane.b32.xlu0 %v436, 112
      %v523 = vpop.permute.xlu0 %522
      %524 = vrot.lane.b32.xlu0 %v437, 112
      %v525 = vpop.permute.xlu0 %524
      %v526 = vsel %vm328, %v523, %v525
      %v527 = vsel %vm328, %v525, %v523
      %v530 = vrot.slane %v526, 4
      %v531 = vrot.slane %v527, 4
      %534 = vst [vmem:[#allocation2 + $0x30] sm:$0xf0] %v530
      %535 = vst [vmem:[#allocation2 + $0x38] sm:$0xf0] %v531
      %536 = vrot.lane.b32.xlu0 %v464, 112
      %v537 = vpop.permute.xlu0 %536
      %538 = vrot.lane.b32.xlu0 %v465, 112
      %v539 = vpop.permute.xlu0 %538
      %v540 = vsel %vm328, %v537, %v539
      %v541 = vsel %vm328, %v539, %v537
      %542 = vst [vmem:[#allocation2 + $0x40] sm:$0xf] %v540
      %543 = vst [vmem:[#allocation2 + $0x48] sm:$0xf] %v541
      %v544 = vld [vmem:[#allocation2] sm:$0xff]
      %v545 = vld [vmem:[#allocation2 + $0x8] sm:$0xff]
      %v546 = vld [vmem:[#allocation2 + $0x10] sm:$0xff]
      %v547 = vld [vmem:[#allocation2 + $0x18] sm:$0xff]
      %v548 = vld [vmem:[#allocation2 + $0x20] sm:$0xff]
      %v549 = vld [vmem:[#allocation2 + $0x28] sm:$0xff]
      %v550 = vld [vmem:[#allocation2 + $0x30] sm:$0xff]
      %v551 = vld [vmem:[#allocation2 + $0x38] sm:$0xff]
      %v552 = vld [vmem:[#allocation2 + $0x40] sm:$0xf]
      %v553 = vld [vmem:[#allocation2 + $0x48] sm:$0xf]
      %v554 = vpack.c.bf16 %v546, %v544
      %v555 = vpack.c.bf16 %v547, %v545
      %v556 = vpack.c.bf16 %v550, %v548
      %v557 = vpack.c.bf16 %v551, %v549
      %v558 = vpack.c.bf16 %v552, %v552
      %v559 = vpack.c.bf16 %v553, %v553
      %561 = vset.pattern.permute.xlu0 0
      %562 = vperm.xlu0 %561, %v229
      %v563 = vpop.permute.xlu0 %562
      %v566 = vsel %vm376, %v227, 0
      %v569 = vsel %vm380, %v558, 0
      %v572 = vsel %vm380, %v559, 0
      %574 = vmatprep.subr.bf16.mxu0 %v555
      %575 = vmatpush1.bf16.msra.mxu0 %v554
      %576 = vmatprep.subr.bf16.mxu0 %v557
      %577 = vmatpush1.bf16.msra.mxu0 %v556
      %578 = vmatprep.subr.bf16.mxu0 %v572
      %579 = vmatpush1.bf16.msra.mxu0 %v569
      %580 = vmatprep.subr.bf16.mxu0 0
      %581 = vmatpush1.bf16.msra.mxu0 0
      %582 = vmatprep.subr.bf16.mxu0 0
      %583 = vmatpush1.bf16.msra.mxu0 0
      %584 = vmatprep.subr.bf16.mxu0 0
      %585 = vmatpush1.bf16.msra.mxu0 0
      %586 = vmatprep.subr.bf16.mxu0 0
      %587 = vmatpush1.bf16.msra.mxu0 0
      %588 = vmatprep.subr.bf16.mxu0 0
      %589 = vmatpush1.bf16.msra.mxu0 0
      %590 = vmatprep.subr.bf16.mxu0 0
      %591 = vmatpush1.bf16.msra.mxu0 0
      %592 = vmatprep.subr.bf16.mxu0 0
      %593 = vmatpush1.bf16.msra.mxu0 0
      %594 = vmatprep.subr.bf16.mxu0 0
      %595 = vmatpush1.bf16.msra.mxu0 0
      %596 = vmatprep.subr.bf16.mxu0 0
      %597 = vmatpush1.bf16.msra.mxu0 0
      %598 = vmatprep.subr.bf16.mxu0 0
      %599 = vmatpush1.bf16.msra.mxu0 0
      %600 = vmatprep.subr.bf16.mxu0 0
      %601 = vmatpush1.bf16.msra.mxu0 0
      %602 = vmatprep.subr.bf16.mxu0 0
      %603 = vmatpush1.bf16.msra.mxu0 0
      %604 = vmatprep.subr.bf16.mxu0 0
      %605 = vmatpush1.bf16.msra.mxu0 0
      %606 = vmatprep.mubr.bf16.mxu0 0
      %607 = vmatmul.mubr.bf16.gmra.mrb[0].mxu0 %v566
      %v608 = vpop.f32.mrb[0].mxu0
      %v609 = vadd.f32 %v563, %v608
      %v610 = vpop.f32.mrb[0].mxu0
      %v611 = vadd.f32 %v563, %v610
      %v612 = vpop.f32.mrb[0].mxu0
      %v613 = vpop.f32.mrb[0].mxu0
      %614 = vdwg.mxu0
      %v615 = vadd.f32 %v609, %v239
      %v616 = vadd.f32 %v611, %v241
      %v617 = vmul.f32 %v615, 0.5
      %v618 = vmul.f32 %v616, 0.5
      %v619 = vmul.f32 %v615, 0.70710677
      %v620 = vmul.f32 %v616, 0.70710677
      %v621 = verf.f32.pop %v619
      %v622 = verf.f32.pop %v620
      %v623 = vadd.f32 %v621, 1.0
      %v624 = vadd.f32 %v622, 1.0
      %v625 = vmul.f32 %v617, %v623
      %v626 = vmul.f32 %v618, %v624
      %v629 = vcombine.low %v625, %v626
      %631 = vst [vmem:[%s224] sm:$0xff] %v629
      %p632 = scmp.lt.s32.totalorder %s16, 1
      %s633 = scalar_select %p632, %s16, 1
      %s634 = smul.addr %s633, 2
      %s635 = smul.addr %s634, 4
      %s636 = scalar_lea.vmem %s5, %s635
      // Predicated region
      $region41: #{resblock_forward.1} parent=39 // pred_check
        %p637 = pneg %p144
      $region42: #{resblock_forward.1} parent=39 // pred_check_branch
        %639 = sbr.rel (%p637) target = $region44
      $region43: #{resblock_forward.1} parent=39 // pred_region
        _
      $region44: #{resblock_forward.1} parent=39 // pred_fallthru
        _
    $region40: #{resblock_forward.1} parent=5 // pred_fallthru
      _
    %p640 = scmp.le.s32.totalorder 2, %s11
    // Predicated region
    $region45: #{resblock_forward.1} parent=5 // pred_check
      %p641 = pneg %p640
    $region46: #{resblock_forward.1} parent=5 // pred_check_branch
      %643 = sbr.rel (%p641) target = $region48
    $region47: #{resblock_forward.1} parent=5 // pred_region
      %s644 = ssub.s32 %s11, 2
      // Predicated region
      $region49: #{resblock_forward.1} parent=47 // pred_check
        %p645 = pneg %p150
      $region50: #{resblock_forward.1} parent=47 // pred_check_branch
        %647 = sbr.rel (%p645) target = $region52
      $region51: #{resblock_forward.1} parent=47 // pred_region
        %p648 = scmp.lt.s32.totalorder %s17, 1
        %s649 = scalar_select %p648, %s17, 1
        %s650 = smul.addr %s649, 2
        %s651 = smul.addr %s650, 4
        %s652 = scalar_lea.vmem %s5, %s651
      $region52: #{resblock_forward.1} parent=47 // pred_fallthru
        _
    $region48: #{resblock_forward.1} parent=5 // pred_fallthru
      _
  $region6: #{resblock_forward.1} parent=0 // loop_footer
    %s15 = sadd.s32 1, %s11
  $region7: #{resblock_forward.1} parent=0 // loop_footer_branch
    %10 = sbr.rel target = $region3
  $region8: #{resblock_forward.1} parent=0 // loop_exit
    _

</llo_original>
